<compile_context>
chip_gen: v7x
topology: tpu7x:2x2x1
jax: 0.10.0
libtpu: 0.0.40
codegen_flags: <defaults>
</compile_context>

<pallas_src>
import jax
import jax.numpy as jnp
from jax.experimental import pallas as pl
from jax.experimental.pallas import tpu as pltpu

_LANES = 128
_MAX_LANE_WIDTH = 8192           # widest slab we form (multiple of 128)
_RAGGED_FULL_BLOCK_BYTES = 4 * 1024 * 1024   # ragged arrays up to this size
                                             # are copied as one full block


def _chip_is_v7() -> bool:
    """Best-effort detection of v7x (2 TensorCores, 3.2 TB/s HBM, 64 MiB VMEM)."""
    try:
        return "v7" in jax.devices()[0].device_kind.lower()
    except Exception:
        return False


def _sublane_multiple(dtype) -> int:
    # Second-to-last block dim must be a multiple of this (unless == full dim).
    itemsize = jnp.dtype(dtype).itemsize
    return {1: 32, 2: 16}.get(itemsize, 8)


def _copy_kernel(x_ref, o_ref):
    # Identity over the current tile (any rank).
    o_ref[...] = x_ref[...]


def _pallas_copy_2d(slab: jax.Array) -> jax.Array:
    """Tiled copy of a 2-D lane-dense slab (last dim % 128 == 0) into a fresh buffer."""
    rows, width = slab.shape
    dtype = slab.dtype
    itemsize = jnp.dtype(dtype).itemsize
    sub = _sublane_multiple(dtype)
    bytes_per_row = width * itemsize
    is_v7 = _chip_is_v7()

    # Generation-aware sizing: bigger blocks on v7x, where per-grid-step
    # overhead (~0.35 us) is relatively expensive at 3.2 TB/s.
    target_block_bytes = (8 if is_v7 else 2) * 1024 * 1024
    vmem_limit_bytes = (48 if is_v7 else 32) * 1024 * 1024

    target_rows = max(1, target_block_bytes // max(bytes_per_row, 1))
    # Megacore split: only v7x has 2 TensorCores; give both work when legal.
    if is_v7 and rows >= 2 * sub:
        target_rows = min(target_rows, rows // 2)

    # Prefer block_rows that (a) is a multiple of the sublane packing,
    # (b) divides rows exactly (every block full -> wide unmasked vst/vld),
    # (c) is as large as possible under the target.
    block_rows = None
    for d in range(min(target_rows, rows), 0, -1):
        if rows % d == 0 and d % sub == 0:
            block_rows = d
            break
    if block_rows is None:
        # No sublane-aligned divisor under the target.  Use the full rows dim
        # as a single block if it fits VMEM (full-extent dims are always legal);
        # otherwise accept a cdiv grid with a partial (masked) final block.
        if rows * bytes_per_row * 4 <= vmem_limit_bytes:
            block_rows = rows
        else:
            block_rows = max(sub, (target_rows // sub) * sub)

    grid = (pl.cdiv(rows, block_rows),)
    cost = pl.CostEstimate(flops=0, transcendentals=0,
                           bytes_accessed=2 * rows * width * itemsize)

    return pl.pallas_call(
        _copy_kernel,
        out_shape=jax.ShapeDtypeStruct((rows, width), dtype),
        grid=grid,
        in_specs=[pl.BlockSpec((block_rows, width), lambda i: (i, 0))],
        out_specs=pl.BlockSpec((block_rows, width), lambda i: (i, 0)),
        compiler_params=pltpu.CompilerParams(
            dimension_semantics=("parallel",),
            vmem_limit_bytes=vmem_limit_bytes,
        ),
        cost_estimate=cost,
    )(slab)


def _pallas_copy_full(x: jax.Array) -> jax.Array:
    """Single full-array-block copy (legal for any shape; used for small ragged inputs)."""
    arr = x if x.ndim >= 2 else x.reshape(1, -1)
    itemsize = jnp.dtype(arr.dtype).itemsize
    out = pl.pallas_call(
        _copy_kernel,
        out_shape=jax.ShapeDtypeStruct(arr.shape, arr.dtype),
        cost_estimate=pl.CostEstimate(flops=0, transcendentals=0,
                                      bytes_accessed=2 * arr.size * itemsize),
    )(arr)
    return out.reshape(x.shape)


def discriminator_forward(x: jax.Array, *, materialize: bool = False) -> jax.Array:
    """Discriminator.forward: out = x.

    Default path is the true optimum for an identity op: return `x` directly,
    moving zero bytes of HBM (this supersedes any aliasing/donation concern).
    Pass `materialize=True` to obtain a *fresh* output buffer produced by a
    Pallas tiled, lane-dense copy (useful when the caller cannot donate `x`
    but needs a distinct buffer).
    """
    if not materialize:
        return x

    orig_shape = x.shape
    orig_dtype = x.dtype
    n = int(x.size)

    if n == 0:
        return jnp.zeros(orig_shape, dtype=orig_dtype)

    if n % _LANES == 0:
        # Lane-dense fast path: factor n into (rows, W) with W the largest
        # multiple of 128 (<= _MAX_LANE_WIDTH) dividing n — wide unmasked stores.
        m = n // _LANES
        k = 1
        for cand in range(min(_MAX_LANE_WIDTH // _LANES, m), 0, -1):
            if m % cand == 0:
                k = cand
                break
        width = k * _LANES
        rows = n // width
        slab = x.reshape(rows, width)          # contiguous reshape — free
        return _pallas_copy_2d(slab).reshape(orig_shape)

    # Ragged sizes (x.size not a multiple of 128): no host-side pad/concat/
    # slice.  Small arrays are copied as one full-extent block.
    itemsize = jnp.dtype(orig_dtype).itemsize
    if n * itemsize <= _RAGGED_FULL_BLOCK_BYTES:
        return _pallas_copy_full(x)

    # TODO(synk): for large ragged inputs, copy the 128-aligned prefix with the
    # tiled kernel and handle the tail with a masked pltpu.store in the last
    # grid step instead of this padded round trip.
    tile = 8 * _LANES
    padded = pl.cdiv(n, tile) * tile
    flat = jnp.ravel(x)
    flat = jnp.concatenate([flat, jnp.zeros((padded - n,), dtype=orig_dtype)])
    out = _pallas_copy_2d(flat.reshape(padded // _LANES, _LANES))
    return out.reshape(-1)[:n].reshape(orig_shape)


if __name__ == "__main__":
    key = jax.random.PRNGKey(0)

    # Primary input: small NCHW tensor consistent with an image discriminator.
    x = jax.random.normal(key, (2, 4, 16, 16), dtype=jnp.float32)

    # Default path: zero-copy identity (no data movement at all).
    out0 = jax.block_until_ready(discriminator_forward(x))
    assert out0.shape == x.shape and out0.dtype == x.dtype
    assert bool(jnp.all(out0 == x))

    # Materialized path: exercises the Pallas tiled copy kernel.
    out1 = jax.block_until_ready(discriminator_forward(x, materialize=True))
    assert out1.shape == x.shape and out1.dtype == x.dtype
    assert bool(jnp.all(out1 == x))

    # Ragged-size input: single full-block Pallas copy (no pad/concat/slice).
    y = jax.random.normal(jax.random.PRNGKey(1), (3, 5, 7), dtype=jnp.float32)
    out_y = jax.block_until_ready(discriminator_forward(y, materialize=True))
    assert out_y.shape == y.shape and out_y.dtype == y.dtype
    assert bool(jnp.all(out_y == y))

    print("KERNEL_OK")
</pallas_src>

<mosaic_0001>
module attributes {stable_mosaic.version = 11 : i64} {
  func.func @_copy_kernel(%arg0: i32, %arg1: memref<1x2048xf32, #tpu.memory_space<vmem>>, %arg2: memref<1x2048xf32, #tpu.memory_space<vmem>>) attributes {dimension_semantics = [#tpu.dimension_semantics<parallel>], iteration_bounds = array<i64: 1>, scalar_prefetch = 0 : i64, scratch_operands = 0 : i64, tpu.core_type = #tpu.core_type<tc>, window_params = [{transform_indices = @transform_0, window_bounds = array<i64: 1, 2048>}, {transform_indices = @transform_1, window_bounds = array<i64: 1, 2048>}]} {
    %c0 = arith.constant 0 : index
    %c0_0 = arith.constant 0 : index
    %0 = vector.load %arg1[%c0, %c0_0] : memref<1x2048xf32, #tpu.memory_space<vmem>>, vector<1x2048xf32>
    %c0_1 = arith.constant 0 : index
    %c0_2 = arith.constant 0 : index
    %1 = vector.load %arg2[%c0_1, %c0_2] : memref<1x2048xf32, #tpu.memory_space<vmem>>, vector<1x2048xf32>
    tpu.vector_store %arg2[%c0_1, %c0_2], %0 {strides = array<i32>} : memref<1x2048xf32, #tpu.memory_space<vmem>>, vector<1x2048xf32>,
    return
  }
  func.func @transform_0(%arg0: i32) -> (i32, i32) {
    %c0_i32 = arith.constant 0 : i32
    %c0_i32_0 = arith.constant 0 : i32
    return %arg0, %c0_i32 : i32, i32
  }
  func.func @transform_1(%arg0: i32) -> (i32, i32) {
    %c0_i32 = arith.constant 0 : i32
    %c0_i32_0 = arith.constant 0 : i32
    return %arg0, %c0_i32 : i32, i32
  }
}

</mosaic_0001>

<llo_original>
// kernel: tpu_custom_call.1
$region0: #{tpu_custom_call.1}
  #allocation0 [shape = 'u32[]', space=smem, size = 0x4, offset = 0x4, fixed_abs, tag = 'smem constant byte address 0x4 - core index']
  #allocation1 [shape = 'u32[144,128]{1,0:T(1,128)}', space=vmem, size = 0x12000, scoped, tag = 'internal scratch']
  %s0 = inlined_call_operand.hbm [shape: f32[1,2048], index: 0, kind: input, shape index: {}]
  %s1 = inlined_call_operand.hbm [shape: f32[1,2048], index: 1, kind: output, shape index: {}]
  %s2 = sld [smem:[#allocation0]]
  $region18: #{tpu_custom_call.1} parent=0
    _
  %s4 = ssub.s32 1, %s2
  %s5 = scalar_select 0, %s4, %s2
  $region1: #{tpu_custom_call.1} parent=0
    #allocation2 [shape = 'u8[8192]{0}', space=vmem, size = 0x2000, scoped, tag = 'input window, operand 0, single buffered']
    #allocation3 [shape = 's32[1]{0}', space=sflag, size = 0x4, scoped, tag = 'scoped memory for tpu_custom_call.1']
    #allocation4 [shape = 's32[1]{0}', space=sflag, size = 0x4, scoped, tag = 'scoped memory for tpu_custom_call.1']
    #allocation5 [shape = 'u8[8192]{0}', space=vmem, size = 0x2000, scoped, tag = 'output window, operand 0, single buffered']
    %6 = vsyncpa [#allocation3], 0
    %7 = vsyncpa [#allocation4], 0
    // Predicated region
    $region2: #{tpu_custom_call.1} parent=1 // pred_check
      _
    $region3: #{tpu_custom_call.1} parent=1 // pred_check_branch
      %9 = sbr.rel (0) target = $region5
    $region4: #{tpu_custom_call.1} parent=1 // pred_region
      %s11 = ssub.s32 256, 256
      %12 = vsyncadd [#allocation3], %s11
      %s14 = sshll.u32 [#allocation2], 4
      %s15 = int_to_ptr.vmem [resolvable:$true] %s14
      %17 = dma.hbm_to_vmem [thread:$0]  %s0, 256, %s15, [#allocation3]
    $region5: #{tpu_custom_call.1} parent=1 // pred_fallthru
      _
    // Predicated region
    $region6: #{tpu_custom_call.1} parent=1 // pred_check
      _
    $region7: #{tpu_custom_call.1} parent=1 // pred_check_branch
      %19 = sbr.rel (0) target = $region9
    $region8: #{tpu_custom_call.1} parent=1 // pred_region
      %20 = dma.done [#allocation3], 256
    $region9: #{tpu_custom_call.1} parent=1 // pred_fallthru
      _
    %v21 = vld [vmem:[#allocation2] sm:$0xff]
    %v22 = vld [vmem:[#allocation2 + $0x8] sm:$0xff]
    %23 = vst [vmem:[#allocation5] sm:$0xff] %v21
    %24 = vst [vmem:[#allocation5 + $0x8] sm:$0xff] %v22
    // Predicated region
    $region10: #{tpu_custom_call.1} parent=1 // pred_check
      _
    $region11: #{tpu_custom_call.1} parent=1 // pred_check_branch
      %26 = sbr.rel (0) target = $region13
    $region12: #{tpu_custom_call.1} parent=1 // pred_region
      %s28 = ssub.s32 256, 256
      %29 = vsyncadd [#allocation4], %s28
      %s31 = sshll.u32 [#allocation5], 4
      %s32 = int_to_ptr.vmem [resolvable:$true] %s31
      %34 = dma.vmem_to_hbm [thread:$0]  %s32, 256, %s1, [#allocation4]
    $region13: #{tpu_custom_call.1} parent=1 // pred_fallthru
      _
    // Predicated region
    $region14: #{tpu_custom_call.1} parent=1 // pred_check
      _
    $region15: #{tpu_custom_call.1} parent=1 // pred_check_branch
      %36 = sbr.rel (0) target = $region17
    $region16: #{tpu_custom_call.1} parent=1 // pred_region
      %37 = dma.done [#allocation4], 256
    $region17: #{tpu_custom_call.1} parent=1 // pred_fallthru
      _
    %38 = vsyncpa [#allocation3], 1
    %39 = vsyncpa [#allocation4], 1

</llo_original>
